<compile_context>
chip_gen: v7x
topology: tpu7x:2x2x1
jax: 0.10.0
libtpu: 0.0.40
codegen_flags: <defaults>
</compile_context>

<pallas_src>
import jax
import jax.numpy as jnp
from jax import lax
from jax.experimental import pallas as pl
from jax.experimental.pallas import tpu as pltpu

LANE = 128


def _round_up(x, m):
    return (x + m - 1) // m * m


def bow_kernel(x_ref, w_ref, b_ref, o_ref, acc_ref):
    k = pl.program_id(0)

    @pl.when(k == 0)
    def _():
        acc_ref[...] = jnp.zeros_like(acc_ref)

    # Contract on V (lane axis of BOTH operands) -> MXU consumes tiles as-is,
    # no materialized [L,V]->[V,L] transpose inside the kernel.
    acc_ref[...] += lax.dot_general(
        x_ref[...], w_ref[...],
        dimension_numbers=(((1,), (1,)), ((), ())),
        preferred_element_type=jnp.float32)

    @pl.when(k == pl.num_programs(0) - 1)
    def _():
        logits = acc_ref[...] + b_ref[...]                 # [B, Lp] f32
        # log_softmax over dim=0 (batch axis), matching F.log_softmax(..., dim=0).
        # Epilogue stays in f32 (v5e VPU/EUP have no bf16 path).
        m = jnp.max(logits, axis=0, keepdims=True)         # [1, Lp]
        shifted = logits - m                               # [B, Lp]
        lse = jnp.log(jnp.sum(jnp.exp(shifted), axis=0, keepdims=True))
        o_ref[...] = (shifted - lse).astype(o_ref.dtype)


def bow_classifier_forward(bow_vec, weight, bias, *,
                           compute_dtype=jnp.float32,
                           v_tile=None,
                           vmem_budget_bytes=16 * 1024 * 1024):
    """bow_vec: [B, V], weight: [L, V], bias: [L] -> [B, L] log-probs over dim=0.

    compute_dtype: dtype of the matmul operands (use jnp.bfloat16 on v6e/v7x for
                   ~2x MXU + half the weight-stream HBM bytes; accumulation and
                   the log_softmax epilogue always stay in f32).
    v_tile:        vocab-axis tile (multiple of 128). Auto-chosen against a
                   conservative VMEM budget (double-buffered inputs), which
                   stays within v7x's smaller scoped VMEM.
    """
    B, V = bow_vec.shape
    L, Vw = weight.shape
    assert V == Vw

    # Lane-dense output / weight-row padding (masked vst.msk -> full vst stores).
    Lp = max(_round_up(L, LANE), LANE)

    bytes_per_el = jnp.dtype(compute_dtype).itemsize
    if v_tile is None:
        # Largest candidate whose double-buffered input tiles fit the budget.
        v_tile = LANE
        for cand in (4096, 2048, 1024, 512, 256, 128):
            if 2 * (B + Lp) * cand * bytes_per_el <= vmem_budget_bytes:
                v_tile = cand
                break
    # Clamp: no point tiling/padding beyond the (lane-rounded) vocab size.
    v_tile = min(v_tile, _round_up(V, LANE))
    v_tile = max(LANE, _round_up(v_tile, LANE))
    Vp = _round_up(V, v_tile)
    nk = Vp // v_tile

    x = bow_vec.astype(compute_dtype)
    w = weight.astype(compute_dtype)
    if Vp != V:
        # Zero-padding the contraction axis is a no-op for the matmul.
        x = jnp.pad(x, ((0, 0), (0, Vp - V)))
        w = jnp.pad(w, ((0, 0), (0, Vp - V)))
    if Lp != L:
        w = jnp.pad(w, ((0, Lp - L), (0, 0)))
    bias2d = jnp.pad(bias.astype(jnp.float32).reshape(1, L), ((0, 0), (0, Lp - L)))

    cost = pl.CostEstimate(
        flops=2 * B * Vp * Lp,
        transcendentals=2 * B * Lp,                       # exp + log in epilogue
        bytes_accessed=bytes_per_el * (B * Vp + Lp * Vp) + 4 * (B * Lp + Lp),
    )

    out_padded = pl.pallas_call(
        bow_kernel,
        out_shape=jax.ShapeDtypeStruct((B, Lp), jnp.float32),
        grid_spec=pltpu.PrefetchScalarGridSpec(
            num_scalar_prefetch=0,
            grid=(nk,),                                    # reduction over vocab
            in_specs=[
                pl.BlockSpec((B, v_tile), lambda k: (0, k)),   # activations
                pl.BlockSpec((Lp, v_tile), lambda k: (0, k)),  # weight stream
                pl.BlockSpec((1, Lp), lambda k: (0, 0)),       # bias (resident)
            ],
            out_specs=pl.BlockSpec((B, Lp), lambda k: (0, 0)), # resident accumulator tile
            scratch_shapes=[pltpu.VMEM((B, Lp), jnp.float32)],
        ),
        compiler_params=pltpu.CompilerParams(
            dimension_semantics=("arbitrary",),            # V axis is a reduction
        ),
        cost_estimate=cost,
    )(x, w, bias2d)

    # TODO(synk): if many independent classifier calls are served at once, add a
    # leading "parallel" grid axis over calls to use v7x's second TensorCore.
    return out_padded[:, :L]


if __name__ == "__main__":
    def ref_forward(x, w, b):
        return jax.nn.log_softmax(x @ w.T + b, axis=0)

    key = jax.random.PRNGKey(0)

    # --- Check 1: module-consistent small shape, f32 compute (strict tolerance) ---
    B, V, L = 4, 128, 8
    kx, kw, kb = jax.random.split(key, 3)
    bow_vec = jax.random.uniform(kx, (B, V), dtype=jnp.float32) * 3.0
    bound = 1.0 / jnp.sqrt(jnp.float32(V))           # nn.Linear default init range
    weight = jax.random.uniform(kw, (L, V), dtype=jnp.float32,
                                minval=-bound, maxval=bound)
    bias = jax.random.uniform(kb, (L,), dtype=jnp.float32,
                              minval=-bound, maxval=bound)

    out = bow_classifier_forward(bow_vec, weight, bias)
    jax.block_until_ready(out)
    ref = ref_forward(bow_vec, weight, bias)
    assert out.shape == (B, L)
    assert jnp.allclose(out, ref, atol=1e-5, rtol=1e-5)

    # --- Check 2: exercise the V-tiled accumulator path (4 grid steps), f32 ---
    B2, V2, L2 = 4, 512, 8
    kx2, kw2, kb2 = jax.random.split(jax.random.PRNGKey(1), 3)
    x2 = jax.random.uniform(kx2, (B2, V2), dtype=jnp.float32) * 3.0
    bound2 = 1.0 / jnp.sqrt(jnp.float32(V2))
    w2 = jax.random.uniform(kw2, (L2, V2), dtype=jnp.float32,
                            minval=-bound2, maxval=bound2)
    b2 = jax.random.uniform(kb2, (L2,), dtype=jnp.float32,
                            minval=-bound2, maxval=bound2)

    out2 = bow_classifier_forward(x2, w2, b2, v_tile=128)
    jax.block_until_ready(out2)
    ref2 = ref_forward(x2, w2, b2)
    assert out2.shape == (B2, L2)
    assert jnp.allclose(out2, ref2, atol=1e-5, rtol=1e-5)

    # --- Check 3: bf16 MXU operands (v6e/v7x fast path), dtype-aware tolerance ---
    out3 = bow_classifier_forward(x2, w2, b2, compute_dtype=jnp.bfloat16, v_tile=128)
    jax.block_until_ready(out3)
    assert jnp.allclose(out3, ref2, atol=1e-1, rtol=1e-1)

    print("KERNEL_OK")
</pallas_src>

<mosaic_0001>
module attributes {stable_mosaic.version = 11 : i64} {
  func.func @bow_kernel(%arg0: i32, %arg1: memref<4x128xf32, #tpu.memory_space<vmem>>, %arg2: memref<128x128xf32, #tpu.memory_space<vmem>>, %arg3: memref<1x128xf32, #tpu.memory_space<vmem>>, %arg4: memref<4x128xf32, #tpu.memory_space<vmem>>, %arg5: memref<4x128xf32, #tpu.memory_space<vmem>>) attributes {dimension_semantics = [#tpu.dimension_semantics<arbitrary>], iteration_bounds = array<i64: 1>, scalar_prefetch = 0 : i64, scratch_operands = 1 : i64, tpu.core_type = #tpu.core_type<tc>, window_params = [{transform_indices = @transform_0, window_bounds = array<i64: 4, 128>}, {transform_indices = @transform_1, window_bounds = array<i64: 128, 128>}, {pipeline_mode = #tpu.pipeline_mode<synchronous>, transform_indices = @transform_2, window_bounds = array<i64: 1, 128>}, {pipeline_mode = #tpu.pipeline_mode<synchronous>, transform_indices = @transform_3, window_bounds = array<i64: 4, 128>}]} {
    %c0_i32 = arith.constant 0 : i32
    %0 = arith.cmpi eq, %arg0, %c0_i32 : i32
    %1 = arith.extui %0 : i1 to i32
    %c0_i32_0 = arith.constant 0 : i32
    %2 = arith.cmpi ne, %1, %c0_i32_0 : i32
    scf.if %2 {
      %cst_10 = arith.constant 0.000000e+00 : f32
      %12 = vector.broadcast %cst_10 : f32 to vector<4x128xf32>
      %c0_11 = arith.constant 0 : index
      %c0_12 = arith.constant 0 : index
      %13 = vector.load %arg5[%c0_11, %c0_12] : memref<4x128xf32, #tpu.memory_space<vmem>>, vector<4x128xf32>
      tpu.vector_store %arg5[%c0_11, %c0_12], %12 {strides = array<i32>} : memref<4x128xf32, #tpu.memory_space<vmem>>, vector<4x128xf32>,
    } else {
    }
    %c0 = arith.constant 0 : index
    %c0_1 = arith.constant 0 : index
    %3 = vector.load %arg5[%c0, %c0_1] : memref<4x128xf32, #tpu.memory_space<vmem>>, vector<4x128xf32>
    %c0_2 = arith.constant 0 : index
    %c0_3 = arith.constant 0 : index
    %4 = vector.load %arg1[%c0_2, %c0_3] : memref<4x128xf32, #tpu.memory_space<vmem>>, vector<4x128xf32>
    %c0_4 = arith.constant 0 : index
    %c0_5 = arith.constant 0 : index
    %5 = vector.load %arg2[%c0_4, %c0_5] : memref<128x128xf32, #tpu.memory_space<vmem>>, vector<128x128xf32>
    %cst = arith.constant dense<0.000000e+00> : vector<4x128xf32>
    %6 = tpu.matmul %4, %5, %cst {dimension_numbers = #tpu.dot_dimension_numbers<[1], [1], [0], [0], [0, 0, 1, 0], [], []>} : vector<4x128xf32>, vector<128x128xf32>, vector<4x128xf32> -> vector<4x128xf32>
    %7 = arith.addf %3, %6 : vector<4x128xf32>
    %c0_6 = arith.constant 0 : index
    %c0_7 = arith.constant 0 : index
    %8 = vector.load %arg5[%c0_6, %c0_7] : memref<4x128xf32, #tpu.memory_space<vmem>>, vector<4x128xf32>
    tpu.vector_store %arg5[%c0_6, %c0_7], %7 {strides = array<i32>} : memref<4x128xf32, #tpu.memory_space<vmem>>, vector<4x128xf32>,
    %c0_i32_8 = arith.constant 0 : i32
    %9 = arith.cmpi eq, %arg0, %c0_i32_8 : i32
    %10 = arith.extui %9 : i1 to i32
    %c0_i32_9 = arith.constant 0 : i32
    %11 = arith.cmpi ne, %10, %c0_i32_9 : i32
    scf.if %11 {
      %c0_10 = arith.constant 0 : index
      %c0_11 = arith.constant 0 : index
      %12 = vector.load %arg5[%c0_10, %c0_11] : memref<4x128xf32, #tpu.memory_space<vmem>>, vector<4x128xf32>
      %c0_12 = arith.constant 0 : index
      %c0_13 = arith.constant 0 : index
      %13 = vector.load %arg3[%c0_12, %c0_13] : memref<1x128xf32, #tpu.memory_space<vmem>>, vector<1x128xf32>
      %14 = vector.broadcast %13 : vector<1x128xf32> to vector<4x128xf32>
      %15 = arith.addf %12, %14 : vector<4x128xf32>
      %cst_14 = arith.constant dense<0xFF800000> : vector<128xf32>
      %16 = vector.multi_reduction <maximumf>, %15, %cst_14 [0] : vector<4x128xf32> to vector<128xf32>
      %17 = vector.shape_cast %16 : vector<128xf32> to vector<1x128xf32>
      %18 = vector.broadcast %17 : vector<1x128xf32> to vector<4x128xf32>
      %19 = arith.subf %15, %18 : vector<4x128xf32>
      %20 = math.exp %19 : vector<4x128xf32>
      %cst_15 = arith.constant dense<0.000000e+00> : vector<128xf32>
      %21 = vector.multi_reduction <add>, %20, %cst_15 [0] : vector<4x128xf32> to vector<128xf32>
      %22 = vector.shape_cast %21 : vector<128xf32> to vector<1x128xf32>
      %23 = math.log %22 : vector<1x128xf32>
      %24 = vector.broadcast %23 : vector<1x128xf32> to vector<4x128xf32>
      %25 = arith.subf %19, %24 : vector<4x128xf32>
      %c0_16 = arith.constant 0 : index
      %c0_17 = arith.constant 0 : index
      %26 = vector.load %arg4[%c0_16, %c0_17] : memref<4x128xf32, #tpu.memory_space<vmem>>, vector<4x128xf32>
      tpu.vector_store %arg4[%c0_16, %c0_17], %25 {strides = array<i32>} : memref<4x128xf32, #tpu.memory_space<vmem>>, vector<4x128xf32>,
    } else {
    }
    return
  }
  func.func @transform_0(%arg0: i32) -> (i32, i32) {
    %c0_i32 = arith.constant 0 : i32
    %c0_i32_0 = arith.constant 0 : i32
    return %c0_i32, %arg0 : i32, i32
  }
  func.func @transform_1(%arg0: i32) -> (i32, i32) {
    %c0_i32 = arith.constant 0 : i32
    %c0_i32_0 = arith.constant 0 : i32
    return %c0_i32, %arg0 : i32, i32
  }
  func.func @transform_2(%arg0: i32) -> (i32, i32) {
    %c0_i32 = arith.constant 0 : i32
    %c0_i32_0 = arith.constant 0 : i32
    %c0_i32_1 = arith.constant 0 : i32
    return %c0_i32, %c0_i32_0 : i32, i32
  }
  func.func @transform_3(%arg0: i32) -> (i32, i32) {
    %c0_i32 = arith.constant 0 : i32
    %c0_i32_0 = arith.constant 0 : i32
    %c0_i32_1 = arith.constant 0 : i32
    return %c0_i32, %c0_i32_0 : i32, i32
  }
}

</mosaic_0001>

<llo_original>
// kernel: tpu_custom_call.1
$region0: #{tpu_custom_call.1}
  #allocation0 [shape = 'u32[]', space=smem, size = 0x4, offset = 0x4, fixed_abs, tag = 'smem constant byte address 0x4 - core index']
  #allocation1 [shape = 'u32[144,128]{1,0:T(1,128)}', space=vmem, size = 0x12000, scoped, tag = 'internal scratch']
  #allocation2 [shape = 'f32[4,128]{1,0:T(4,128)}', space=vmem, size = 0x800, scoped, tag = 'scratch operand']
  %s0 = inlined_call_operand.hbm [shape: f32[4,128], index: 0, kind: input, shape index: {}]
  %s1 = inlined_call_operand.hbm [shape: f32[128,128], index: 1, kind: input, shape index: {}]
  %s2 = inlined_call_operand.vmem [shape: f32[1,128], index: 2, kind: input, shape index: {}]
  %s3 = inlined_call_operand.hbm [shape: f32[4,128], index: 3, kind: output, shape index: {}]
  %s4 = sld [smem:[#allocation0]]
  $region38: #{tpu_custom_call.1} parent=0
    _
  %s6 = ssub.s32 1, %s4
  %s7 = scalar_select 0, %s6, %s4
  $region1: #{tpu_custom_call.1} parent=0
    #allocation3 [shape = 'u8[2048]{0}', space=vmem, size = 0x800, scoped, tag = 'input window, operand 0, single buffered']
    #allocation4 [shape = 's32[1]{0}', space=sflag, size = 0x4, scoped, tag = 'scoped memory for tpu_custom_call.1']
    #allocation5 [shape = 's32[1]{0}', space=sflag, size = 0x4, scoped, tag = 'scoped memory for tpu_custom_call.1']
    #allocation6 [shape = 'u8[65536]{0}', space=vmem, size = 0x10000, scoped, tag = 'input window, operand 1, single buffered']
    #allocation7 [shape = 's32[1]{0}', space=sflag, size = 0x4, scoped, tag = 'scoped memory for tpu_custom_call.1']
    #allocation8 [shape = 'u8[2048]{0}', space=vmem, size = 0x800, scoped, tag = 'output window, operand 0, single buffered']
    %8 = vsyncpa [#allocation4], 0
    %9 = vsyncpa [#allocation7], 0
    %10 = vsyncpa [#allocation5], 0
    // Predicated region
    $region2: #{tpu_custom_call.1} parent=1 // pred_check
      _
    $region3: #{tpu_custom_call.1} parent=1 // pred_check_branch
      %12 = sbr.rel (0) target = $region5
    $region4: #{tpu_custom_call.1} parent=1 // pred_region
      %s14 = ssub.s32 64, 64
      %15 = vsyncadd [#allocation4], %s14
      %s17 = sshll.u32 [#allocation3], 4
      %s18 = int_to_ptr.vmem [resolvable:$true] %s17
      %20 = dma.hbm_to_vmem [thread:$0]  %s0, 64, %s18, [#allocation4]
    $region5: #{tpu_custom_call.1} parent=1 // pred_fallthru
      _
    // Predicated region
    $region6: #{tpu_custom_call.1} parent=1 // pred_check
      _
    $region7: #{tpu_custom_call.1} parent=1 // pred_check_branch
      %22 = sbr.rel (0) target = $region9
    $region8: #{tpu_custom_call.1} parent=1 // pred_region
      %s24 = ssub.s32 2048, 2048
      %25 = vsyncadd [#allocation7], %s24
      %s26 = sshll.u32 [#allocation6], 4
      %s27 = int_to_ptr.vmem [resolvable:$true] %s26
      %32 = dma.hbm_to_vmem [thread:$0]  %s1, 2048, %s27, [#allocation7], 128, 128, 8
    $region9: #{tpu_custom_call.1} parent=1 // pred_fallthru
      _
    // Predicated region
    $region10: #{tpu_custom_call.1} parent=1 // pred_check
      _
    $region11: #{tpu_custom_call.1} parent=1 // pred_check_branch
      %34 = sbr.rel (0) target = $region13
    $region12: #{tpu_custom_call.1} parent=1 // pred_region
      _
    $region13: #{tpu_custom_call.1} parent=1 // pred_fallthru
      _
    // Predicated region
    $region14: #{tpu_custom_call.1} parent=1 // pred_check
      _
    $region15: #{tpu_custom_call.1} parent=1 // pred_check_branch
      %36 = sbr.rel (0) target = $region17
    $region16: #{tpu_custom_call.1} parent=1 // pred_region
      %37 = dma.done [#allocation4], 64
    $region17: #{tpu_custom_call.1} parent=1 // pred_fallthru
      _
    // Predicated region
    $region18: #{tpu_custom_call.1} parent=1 // pred_check
      _
    $region19: #{tpu_custom_call.1} parent=1 // pred_check_branch
      %39 = sbr.rel (0) target = $region21
    $region20: #{tpu_custom_call.1} parent=1 // pred_region
      %40 = dma.done [#allocation7], 2048
    $region21: #{tpu_custom_call.1} parent=1 // pred_fallthru
      _
    %p41 = scmp.eq.s32.totalorder 0, 0
    // Predicated region
    $region22: #{tpu_custom_call.1} parent=1 // pred_check
      %p42 = pneg %p41
    $region23: #{tpu_custom_call.1} parent=1 // pred_check_branch
      %44 = sbr.rel (%p42) target = $region25
    $region24: #{tpu_custom_call.1} parent=1 // pred_region
      %45 = vst [vmem:[#allocation2] sm:$0xf] 0.0
    $region25: #{tpu_custom_call.1} parent=1 // pred_fallthru
      _
    %v46 = vld [vmem:[#allocation2] sm:$0xf]
    %v47 = vld [vmem:[#allocation3] sm:$0xf]
    %v48 = vld [vmem:[#allocation6] sm:$0xff]
    %v49 = vld [vmem:[#allocation6 + $0x8] sm:$0xff]
    %v50 = vld [vmem:[#allocation6 + $0x10] sm:$0xff]
    %v51 = vld [vmem:[#allocation6 + $0x18] sm:$0xff]
    %v52 = vld [vmem:[#allocation6 + $0x20] sm:$0xff]
    %v53 = vld [vmem:[#allocation6 + $0x28] sm:$0xff]
    %v54 = vld [vmem:[#allocation6 + $0x30] sm:$0xff]
    %v55 = vld [vmem:[#allocation6 + $0x38] sm:$0xff]
    %v56 = vld [vmem:[#allocation6 + $0x40] sm:$0xff]
    %v57 = vld [vmem:[#allocation6 + $0x48] sm:$0xff]
    %v58 = vld [vmem:[#allocation6 + $0x50] sm:$0xff]
    %v59 = vld [vmem:[#allocation6 + $0x58] sm:$0xff]
    %v60 = vld [vmem:[#allocation6 + $0x60] sm:$0xff]
    %v61 = vld [vmem:[#allocation6 + $0x68] sm:$0xff]
    %v62 = vld [vmem:[#allocation6 + $0x70] sm:$0xff]
    %v63 = vld [vmem:[#allocation6 + $0x78] sm:$0xff]
    %64 = vmatprep.subr.mxu0 0.0
    %65 = vmatpush1.xpose.msra.mxu0 %v48
    %66 = vmatprep.subr.mxu0 0.0
    %67 = vmatpush1.xpose.msra.mxu0 %v49
    %68 = vmatprep.subr.mxu0 0.0
    %69 = vmatpush1.xpose.msra.mxu0 %v50
    %70 = vmatprep.subr.mxu0 0.0
    %71 = vmatpush1.xpose.msra.mxu0 %v51
    %72 = vmatprep.subr.mxu0 0.0
    %73 = vmatpush1.xpose.msra.mxu0 %v52
    %74 = vmatprep.subr.mxu0 0.0
    %75 = vmatpush1.xpose.msra.mxu0 %v53
    %76 = vmatprep.subr.mxu0 0.0
    %77 = vmatpush1.xpose.msra.mxu0 %v54
    %78 = vmatprep.subr.mxu0 0.0
    %79 = vmatpush1.xpose.msra.mxu0 %v55
    %80 = vmatprep.subr.mxu0 0.0
    %81 = vmatpush1.xpose.msra.mxu0 %v56
    %82 = vmatprep.subr.mxu0 0.0
    %83 = vmatpush1.xpose.msra.mxu0 %v57
    %84 = vmatprep.subr.mxu0 0.0
    %85 = vmatpush1.xpose.msra.mxu0 %v58
    %86 = vmatprep.subr.mxu0 0.0
    %87 = vmatpush1.xpose.msra.mxu0 %v59
    %88 = vmatprep.subr.mxu0 0.0
    %89 = vmatpush1.xpose.msra.mxu0 %v60
    %90 = vmatprep.subr.mxu0 0.0
    %91 = vmatpush1.xpose.msra.mxu0 %v61
    %92 = vmatprep.subr.mxu0 0.0
    %93 = vmatpush1.xpose.msra.mxu0 %v62
    %94 = vmatprep.subr.mxu0 0.0
    %95 = vmatpush1.xpose.msra.mxu0 %v63
    %96 = vmatprep.subr.mxu0 0.0
    %97 = vmatpush1.xpose.msra.mxu0 0.0
    %98 = vmatprep.subr.mxu0 0.0
    %99 = vmatpush1.xpose.msra.mxu0 0.0
    %100 = vmatprep.subr.mxu0 0.0
    %101 = vmatpush1.xpose.msra.mxu0 0.0
    %102 = vmatprep.subr.mxu0 0.0
    %103 = vmatpush1.xpose.msra.mxu0 0.0
    %104 = vmatprep.subr.mxu0 0.0
    %105 = vmatpush1.xpose.msra.mxu0 0.0
    %106 = vmatprep.subr.mxu0 0.0
    %107 = vmatpush1.xpose.msra.mxu0 0.0
    %108 = vmatprep.subr.mxu0 0.0
    %109 = vmatpush1.xpose.msra.mxu0 0.0
    %110 = vmatprep.subr.mxu0 0.0
    %111 = vmatpush1.xpose.msra.mxu0 0.0
    %112 = vmatprep.subr.mxu0 0.0
    %113 = vmatpush1.xpose.msra.mxu0 0.0
    %114 = vmatprep.subr.mxu0 0.0
    %115 = vmatpush1.xpose.msra.mxu0 0.0
    %116 = vmatprep.subr.mxu0 0.0
    %117 = vmatpush1.xpose.msra.mxu0 0.0
    %118 = vmatprep.subr.mxu0 0.0
    %119 = vmatpush1.xpose.msra.mxu0 0.0
    %120 = vmatprep.subr.mxu0 0.0
    %121 = vmatpush1.xpose.msra.mxu0 0.0
    %122 = vmatprep.subr.mxu0 0.0
    %123 = vmatpush1.xpose.msra.mxu0 0.0
    %124 = vmatprep.subr.mxu0 0.0
    %125 = vmatpush1.xpose.msra.mxu0 0.0
    %126 = vmatprep.subr.mxu0 0.0
    %127 = vmatpush1.xpose.msra.mxu0 0.0
    %128 = vmatprep.mubr.f32.mxu0 0.0
    %129 = vmatmul.mubr.f32.gmra.mrb[0].mxu0 %v47
    %v130 = vpop.f32.mrb[0].mxu0
    %v131 = vadd.f32 0.0, %v130
    %v132 = vpop.f32.mrb[0].mxu0
    %133 = vdwg.mxu0
    %v134 = vadd.f32 %v46, %v131
    %135 = vst [vmem:[#allocation2] sm:$0xf] %v134
    // Predicated region
    $region26: #{tpu_custom_call.1} parent=1 // pred_check
      %p136 = pneg %p41
    $region27: #{tpu_custom_call.1} parent=1 // pred_check_branch
      %138 = sbr.rel (%p136) target = $region29
    $region28: #{tpu_custom_call.1} parent=1 // pred_region
      %v139 = vld [vmem:[#allocation2] sm:$0xf]
      %v140 = vld [vmem:[%s2] sm:$0x1]
      %v142 = vlaneseq
      %v143 = vshrl.u32 %v142, 7
      %v144 = vsub.s32 0, %v143
      %v145 = vrot.slane %v140, %v144
      %v147 = vadd.f32 %v139, %v145
      %vm148 = vcmask 1043456
      %v149 = vsel %vm148, %v147, -inf
      %v150 = vrot.slane %v149, 4
      %v151 = vmax.f32 %v149, %v150
      %v152 = vrot.slane %v151, 2
      %v153 = vmax.f32 %v151, %v152
      %v154 = vrot.slane %v153, 1
      %v155 = vmax.f32 %v153, %v154
      %v156 = vsub.f32 %v147, %v155
      %v157 = vmul.f32 %v156, 1.442695
      %v158 = vpow.pop %v157
      %v159 = vsel %vm148, %v158, 0.0
      %v160 = vrot.slane %v159, 4
      %v161 = vadd.f32 %v159, %v160
      %v162 = vrot.slane %v161, 2
      %v163 = vadd.f32 %v161, %v162
      %v164 = vrot.slane %v163, 1
      %v165 = vadd.f32 %v163, %v164
      %v166 = vlog2.pop %v165
      %v167 = vmul.f32 %v166, 0.6931472
      %v168 = vsub.f32 %v156, %v167
      %169 = vst [vmem:[#allocation8] sm:$0xf] %v168
    $region29: #{tpu_custom_call.1} parent=1 // pred_fallthru
      _
    // Predicated region
    $region30: #{tpu_custom_call.1} parent=1 // pred_check
      _
    $region31: #{tpu_custom_call.1} parent=1 // pred_check_branch
      %171 = sbr.rel (0) target = $region33
    $region32: #{tpu_custom_call.1} parent=1 // pred_region
      %s173 = ssub.s32 64, 64
      %174 = vsyncadd [#allocation5], %s173
      %s176 = sshll.u32 [#allocation8], 4
      %s177 = int_to_ptr.vmem [resolvable:$true] %s176
      %179 = dma.vmem_to_hbm [thread:$0]  %s177, 64, %s3, [#allocation5]
    $region33: #{tpu_custom_call.1} parent=1 // pred_fallthru
      _
    // Predicated region
    $region34: #{tpu_custom_call.1} parent=1 // pred_check
      _
    $region35: #{tpu_custom_call.1} parent=1 // pred_check_branch
      %181 = sbr.rel (0) target = $region37
    $region36: #{tpu_custom_call.1} parent=1 // pred_region
      %182 = dma.done [#allocation5], 64
    $region37: #{tpu_custom_call.1} parent=1 // pred_fallthru
      _
    %183 = vsyncpa [#allocation4], 1
    %184 = vsyncpa [#allocation7], 1
    %185 = vsyncpa [#allocation5], 1

</llo_original>
